<compile_context>
chip_gen: v7x
topology: tpu7x:2x2x1
jax: 0.10.0
libtpu: 0.0.40
codegen_flags: <defaults>
</compile_context>

<pallas_src>
import functools

import jax
import jax.numpy as jnp
import numpy as np
from jax.experimental import pallas as pl
from jax.experimental.pallas import tpu as pltpu

DROPOUT_P = 0.35
INPUT_DIM = 39
LANE = 128
SUBLANE = 8
MAX_BLOCK_M = 512  # rows per batch tile; tiny vs. 32 MiB scoped VMEM (v7x-safe)


def _round_up(x, m):
    return (x + m - 1) // m * m


def basic_block_kernel(*refs, keep_threshold, inv_keep, apply_dropout):
    # refs: (x, w, b, [bits], out)
    if apply_dropout:
        x_ref, w_ref, b_ref, bits_ref, o_ref = refs
    else:
        x_ref, w_ref, b_ref, o_ref = refs
        bits_ref = None

    # Linear (x @ W_pre_transposed + b) on the MXU, f32 accumulate.
    y = jnp.dot(x_ref[...], w_ref[...], preferred_element_type=jnp.float32)
    y = y + b_ref[...]

    # ReLU (f32 VPU math on every generation).
    y = jnp.maximum(y, 0.0)

    # Inverted dropout: keep iff bits < keep_prob * 2^32, scale kept by 1/keep.
    if apply_dropout:
        keep = bits_ref[...] < np.uint32(keep_threshold)
        y = jnp.where(keep, y * inv_keep, 0.0)

    o_ref[...] = y.astype(o_ref.dtype)


def prepare_params(weight, bias):
    """One-time parameter prep: transpose to (in_dim, out_dim) and pad the
    output (lane) axis to a multiple of 128 so the kernel stores lane-dense."""
    out_dim, in_dim = weight.shape
    n_pad = _round_up(out_dim, LANE)
    w_t = jnp.zeros((in_dim, n_pad), weight.dtype).at[:, :out_dim].set(weight.T)
    b_p = jnp.zeros((1, n_pad), bias.dtype).at[:, :out_dim].set(bias)
    return w_t, b_p


def basic_block(x, w_t, b_p, out_dim, *, dropout_p=DROPOUT_P, training=True,
                rng_key=None, max_block_m=MAX_BLOCK_M):
    """Forward pass of BasicBlock.

    x:       (batch, input_dim) float32
    w_t:     (input_dim, out_dim_padded) float32  (from prepare_params)
    b_p:     (1, out_dim_padded) float32          (from prepare_params)
    out_dim: true output width (<= out_dim_padded)
    rng_key: jax PRNG key for dropout (required if training and dropout_p > 0)
    """
    batch, in_dim = x.shape
    n_pad = w_t.shape[1]

    # Batch tiling: pad batch to a multiple of the tile, tile over the grid.
    bm = min(max_block_m, _round_up(batch, SUBLANE))
    m_pad = _round_up(batch, bm)
    if m_pad != batch:
        x = jnp.zeros((m_pad, in_dim), x.dtype).at[:batch].set(x)
    grid = (m_pad // bm,)

    apply_dropout = bool(training) and dropout_p > 0.0
    keep_prob = 1.0 - dropout_p
    keep_threshold = min(int(round(keep_prob * 2.0**32)), 2**32 - 1)

    in_specs = [
        pl.BlockSpec((bm, in_dim), lambda i: (i, 0)),       # x tile (streamed)
        pl.BlockSpec((in_dim, n_pad), lambda i: (0, 0)),    # weight (resident)
        pl.BlockSpec((1, n_pad), lambda i: (0, 0)),         # bias (resident)
    ]
    args = [x, w_t, b_p]

    if apply_dropout:
        if rng_key is None:
            raise ValueError("rng_key required when training with dropout")
        bits = jax.random.bits(rng_key, (m_pad, n_pad), dtype=jnp.uint32)
        in_specs.append(pl.BlockSpec((bm, n_pad), lambda i: (i, 0)))
        args.append(bits)

    kernel = functools.partial(
        basic_block_kernel,
        keep_threshold=keep_threshold,
        inv_keep=float(1.0 / keep_prob),
        apply_dropout=apply_dropout,
    )

    out = pl.pallas_call(
        kernel,
        out_shape=jax.ShapeDtypeStruct((m_pad, n_pad), x.dtype),
        grid_spec=pltpu.PrefetchScalarGridSpec(
            num_scalar_prefetch=0,
            grid=grid,
            in_specs=in_specs,
            out_specs=pl.BlockSpec((bm, n_pad), lambda i: (i, 0)),
        ),
        compiler_params=pltpu.CompilerParams(
            dimension_semantics=("parallel",)),
    )(*args)

    # Strip the batch / lane padding (plain-JAX glue).
    return out[:batch, :out_dim]


if __name__ == "__main__":
    key = jax.random.PRNGKey(0)
    k_x, k_w, k_b, k_drop = jax.random.split(key, 4)

    batch = 8
    input_dim = INPUT_DIM      # 39, as in the reference module
    output_dim = 64

    # Deterministic PyTorch-style (Kaiming-uniform-ish) parameter init.
    bound = 1.0 / jnp.sqrt(jnp.float32(input_dim))
    x = jax.random.normal(k_x, (batch, input_dim), dtype=jnp.float32)
    weight = jax.random.uniform(
        k_w, (output_dim, input_dim), minval=-bound, maxval=bound,
        dtype=jnp.float32)
    bias = jax.random.uniform(
        k_b, (output_dim,), minval=-bound, maxval=bound, dtype=jnp.float32)

    # One-time parameter prep (pre-transpose + lane padding).
    w_t, b_p = prepare_params(weight, bias)

    # Training-mode forward (dropout active), same as the nn.Module default.
    out = basic_block(x, w_t, b_p, output_dim, training=True, rng_key=k_drop)
    out = jax.block_until_ready(out)
    assert out.shape == (batch, output_dim)

    # Eval-mode forward (no dropout) against a pure-JAX reference.
    out_eval = basic_block(x, w_t, b_p, output_dim, training=False)
    out_eval = jax.block_until_ready(out_eval)
    ref_eval = jnp.maximum(x @ weight.T + bias, 0.0)
    assert jnp.allclose(out_eval, ref_eval, atol=1e-5, rtol=1e-5)

    # Training-mode sanity: every element is either dropped (0) or equals the
    # eval activation scaled by 1/keep_prob.
    keep_prob = 1.0 - DROPOUT_P
    ok = jnp.isclose(out, 0.0, atol=1e-6) | jnp.isclose(
        out, ref_eval / keep_prob, atol=1e-5, rtol=1e-5)
    assert bool(ok.all())

    print("KERNEL_OK")
</pallas_src>

<mosaic_0001>
module attributes {stable_mosaic.version = 11 : i64} {
  func.func @basic_block_kernel(%arg0: i32, %arg1: memref<8x39xf32, #tpu.memory_space<vmem>>, %arg2: memref<39x128xf32, #tpu.memory_space<vmem>>, %arg3: memref<1x128xf32, #tpu.memory_space<vmem>>, %arg4: memref<8x128xi32, #tpu.memory_space<vmem>>, %arg5: memref<8x128xf32, #tpu.memory_space<vmem>>) attributes {dimension_semantics = [#tpu.dimension_semantics<parallel>], iteration_bounds = array<i64: 1>, scalar_prefetch = 0 : i64, scratch_operands = 0 : i64, tpu.core_type = #tpu.core_type<tc>, window_params = [{transform_indices = @transform_0, window_bounds = array<i64: 8, 39>}, {pipeline_mode = #tpu.pipeline_mode<synchronous>, transform_indices = @transform_1, window_bounds = array<i64: 39, 128>}, {pipeline_mode = #tpu.pipeline_mode<synchronous>, transform_indices = @transform_2, window_bounds = array<i64: 1, 128>}, {transform_indices = @transform_3, window_bounds = array<i64: 8, 128>}, {transform_indices = @transform_4, window_bounds = array<i64: 8, 128>}]} {
    %c0 = arith.constant 0 : index
    %c0_0 = arith.constant 0 : index
    %0 = vector.load %arg1[%c0, %c0_0] : memref<8x39xf32, #tpu.memory_space<vmem>>, vector<8x39xf32>
    %c0_1 = arith.constant 0 : index
    %c0_2 = arith.constant 0 : index
    %1 = vector.load %arg2[%c0_1, %c0_2] : memref<39x128xf32, #tpu.memory_space<vmem>>, vector<39x128xf32>
    %cst = arith.constant dense<0.000000e+00> : vector<8x128xf32>
    %2 = tpu.matmul %0, %1, %cst {dimension_numbers = #tpu.dot_dimension_numbers<[1], [0], [0], [1], [0, 0, 1, 1], [], []>} : vector<8x39xf32>, vector<39x128xf32>, vector<8x128xf32> -> vector<8x128xf32>
    %c0_3 = arith.constant 0 : index
    %c0_4 = arith.constant 0 : index
    %3 = vector.load %arg3[%c0_3, %c0_4] : memref<1x128xf32, #tpu.memory_space<vmem>>, vector<1x128xf32>
    %4 = vector.broadcast %3 : vector<1x128xf32> to vector<8x128xf32>
    %5 = arith.addf %2, %4 : vector<8x128xf32>
    %cst_5 = arith.constant 0.000000e+00 : f32
    %6 = vector.broadcast %cst_5 : f32 to vector<8x128xf32>
    %7 = arith.maximumf %5, %6 : vector<8x128xf32>
    %c0_6 = arith.constant 0 : index
    %c0_7 = arith.constant 0 : index
    %8 = vector.load %arg4[%c0_6, %c0_7] : memref<8x128xi32, #tpu.memory_space<vmem>>, vector<8x128xi32>
    %c-1503238554_i32 = arith.constant -1503238554 : i32
    %9 = vector.broadcast %c-1503238554_i32 : i32 to vector<8x128xi32>
    %10 = arith.cmpi ult, %8, %9 : vector<8x128xi32>
    %cst_8 = arith.constant 1.53846157 : f32
    %11 = vector.broadcast %cst_8 : f32 to vector<8x128xf32>
    %12 = arith.mulf %7, %11 : vector<8x128xf32>
    %cst_9 = arith.constant 0.000000e+00 : f32
    %13 = vector.broadcast %cst_9 : f32 to vector<8x128xf32>
    %14 = arith.select %10, %12, %13 : vector<8x128xi1>, vector<8x128xf32>
    %c0_10 = arith.constant 0 : index
    %c0_11 = arith.constant 0 : index
    %15 = vector.load %arg5[%c0_10, %c0_11] : memref<8x128xf32, #tpu.memory_space<vmem>>, vector<8x128xf32>
    tpu.vector_store %arg5[%c0_10, %c0_11], %14 {strides = array<i32>} : memref<8x128xf32, #tpu.memory_space<vmem>>, vector<8x128xf32>,
    return
  }
  func.func @transform_0(%arg0: i32) -> (i32, i32) {
    %c0_i32 = arith.constant 0 : i32
    %c0_i32_0 = arith.constant 0 : i32
    return %arg0, %c0_i32 : i32, i32
  }
  func.func @transform_1(%arg0: i32) -> (i32, i32) {
    %c0_i32 = arith.constant 0 : i32
    %c0_i32_0 = arith.constant 0 : i32
    %c0_i32_1 = arith.constant 0 : i32
    return %c0_i32, %c0_i32_0 : i32, i32
  }
  func.func @transform_2(%arg0: i32) -> (i32, i32) {
    %c0_i32 = arith.constant 0 : i32
    %c0_i32_0 = arith.constant 0 : i32
    %c0_i32_1 = arith.constant 0 : i32
    return %c0_i32, %c0_i32_0 : i32, i32
  }
  func.func @transform_3(%arg0: i32) -> (i32, i32) {
    %c0_i32 = arith.constant 0 : i32
    %c0_i32_0 = arith.constant 0 : i32
    return %arg0, %c0_i32 : i32, i32
  }
  func.func @transform_4(%arg0: i32) -> (i32, i32) {
    %c0_i32 = arith.constant 0 : i32
    %c0_i32_0 = arith.constant 0 : i32
    return %arg0, %c0_i32 : i32, i32
  }
}

</mosaic_0001>

<llo_original>
// kernel: tpu_custom_call.1
$region0: #{tpu_custom_call.1}
  #allocation0 [shape = 'u32[]', space=smem, size = 0x4, offset = 0x4, fixed_abs, tag = 'smem constant byte address 0x4 - core index']
  #allocation1 [shape = 'u32[144,128]{1,0:T(1,128)}', space=vmem, size = 0x12000, scoped, tag = 'internal scratch']
  %s0 = inlined_call_operand.hbm [shape: f32[8,39], index: 0, kind: input, shape index: {}]
  %s1 = inlined_call_operand.hbm [shape: f32[39,128], index: 1, kind: input, shape index: {}]
  %s2 = inlined_call_operand.vmem [shape: f32[1,128], index: 2, kind: input, shape index: {}]
  %s3 = inlined_call_operand.vmem [shape: u32[8,128], index: 3, kind: input, shape index: {}]
  %s4 = inlined_call_operand.hbm [shape: f32[8,128], index: 4, kind: output, shape index: {}]
  %s5 = sld [smem:[#allocation0]]
  $region34: #{tpu_custom_call.1} parent=0
    _
  %s7 = ssub.s32 1, %s5
  %s8 = scalar_select 0, %s7, %s5
  $region1: #{tpu_custom_call.1} parent=0
    #allocation2 [shape = 'u8[4096]{0}', space=vmem, size = 0x1000, scoped, tag = 'input window, operand 0, single buffered']
    #allocation3 [shape = 's32[1]{0}', space=sflag, size = 0x4, scoped, tag = 'scoped memory for tpu_custom_call.1']
    #allocation4 [shape = 's32[1]{0}', space=sflag, size = 0x4, scoped, tag = 'scoped memory for tpu_custom_call.1']
    #allocation5 [shape = 'u8[20480]{0}', space=vmem, size = 0x5000, scoped, tag = 'input window, operand 1, single buffered']
    #allocation6 [shape = 's32[1]{0}', space=sflag, size = 0x4, scoped, tag = 'scoped memory for tpu_custom_call.1']
    #allocation7 [shape = 'u8[4096]{0}', space=vmem, size = 0x1000, scoped, tag = 'output window, operand 0, single buffered']
    %9 = vsyncpa [#allocation3], 0
    %10 = vsyncpa [#allocation6], 0
    %11 = vsyncpa [#allocation4], 0
    // Predicated region
    $region2: #{tpu_custom_call.1} parent=1 // pred_check
      _
    $region3: #{tpu_custom_call.1} parent=1 // pred_check_branch
      %13 = sbr.rel (0) target = $region5
    $region4: #{tpu_custom_call.1} parent=1 // pred_region
      %s15 = ssub.s32 128, 128
      %16 = vsyncadd [#allocation3], %s15
      %s18 = sshll.u32 [#allocation2], 4
      %s19 = int_to_ptr.vmem [resolvable:$true] %s18
      %21 = dma.hbm_to_vmem [thread:$0]  %s0, 128, %s19, [#allocation3]
    $region5: #{tpu_custom_call.1} parent=1 // pred_fallthru
      _
    // Predicated region
    $region6: #{tpu_custom_call.1} parent=1 // pred_check
      _
    $region7: #{tpu_custom_call.1} parent=1 // pred_check_branch
      %23 = sbr.rel (0) target = $region9
    $region8: #{tpu_custom_call.1} parent=1 // pred_region
      %s25 = ssub.s32 640, 640
      %26 = vsyncadd [#allocation6], %s25
      %s27 = sshll.u32 [#allocation5], 4
      %s28 = int_to_ptr.vmem [resolvable:$true] %s27
      %33 = dma.hbm_to_vmem [thread:$0]  %s1, 640, %s28, [#allocation6], 128, 128, 8
    $region9: #{tpu_custom_call.1} parent=1 // pred_fallthru
      _
    // Predicated region
    $region10: #{tpu_custom_call.1} parent=1 // pred_check
      _
    $region11: #{tpu_custom_call.1} parent=1 // pred_check_branch
      %35 = sbr.rel (0) target = $region13
    $region12: #{tpu_custom_call.1} parent=1 // pred_region
      _
    $region13: #{tpu_custom_call.1} parent=1 // pred_fallthru
      _
    // Predicated region
    $region14: #{tpu_custom_call.1} parent=1 // pred_check
      _
    $region15: #{tpu_custom_call.1} parent=1 // pred_check_branch
      %37 = sbr.rel (0) target = $region17
    $region16: #{tpu_custom_call.1} parent=1 // pred_region
      _
    $region17: #{tpu_custom_call.1} parent=1 // pred_fallthru
      _
    // Predicated region
    $region18: #{tpu_custom_call.1} parent=1 // pred_check
      _
    $region19: #{tpu_custom_call.1} parent=1 // pred_check_branch
      %39 = sbr.rel (0) target = $region21
    $region20: #{tpu_custom_call.1} parent=1 // pred_region
      %40 = dma.done [#allocation3], 128
    $region21: #{tpu_custom_call.1} parent=1 // pred_fallthru
      _
    // Predicated region
    $region22: #{tpu_custom_call.1} parent=1 // pred_check
      _
    $region23: #{tpu_custom_call.1} parent=1 // pred_check_branch
      %42 = sbr.rel (0) target = $region25
    $region24: #{tpu_custom_call.1} parent=1 // pred_region
      %43 = dma.done [#allocation6], 640
    $region25: #{tpu_custom_call.1} parent=1 // pred_fallthru
      _
    %v44 = vld [vmem:[#allocation2] sm:$0xff]
    %v45 = vld [vmem:[#allocation5] sm:$0xff]
    %v46 = vld [vmem:[#allocation5 + $0x8] sm:$0xff]
    %v47 = vld [vmem:[#allocation5 + $0x10] sm:$0xff]
    %v48 = vld [vmem:[#allocation5 + $0x18] sm:$0xff]
    %v49 = vld [vmem:[#allocation5 + $0x20] sm:$0x7f]
    %v50 = vld [vmem:[%s2] sm:$0x1]
    %v52 = vlaneseq
    %v53 = vshrl.u32 %v52, 7
    %v54 = vsub.s32 0, %v53
    %v55 = vrot.slane %v50, %v54
    %vm57 = vcmask 318464
    %v59 = vsel %vm57, %v44, 0
    %vm61 = vcmask 1046528
    %v63 = vsel %vm61, %v49, 0
    %65 = vmatprep.subr.mxu0 0.0
    %66 = vmatpush1.msra.mxu0 %v45
    %67 = vmatprep.subr.mxu0 0.0
    %68 = vmatpush1.msra.mxu0 %v46
    %69 = vmatprep.subr.mxu0 0.0
    %70 = vmatpush1.msra.mxu0 %v47
    %71 = vmatprep.subr.mxu0 0.0
    %72 = vmatpush1.msra.mxu0 %v48
    %73 = vmatprep.subr.mxu0 0.0
    %74 = vmatpush1.msra.mxu0 %v63
    %75 = vmatprep.subr.mxu0 0.0
    %76 = vmatpush1.msra.mxu0 0.0
    %77 = vmatprep.subr.mxu0 0.0
    %78 = vmatpush1.msra.mxu0 0.0
    %79 = vmatprep.subr.mxu0 0.0
    %80 = vmatpush1.msra.mxu0 0.0
    %81 = vmatprep.subr.mxu0 0.0
    %82 = vmatpush1.msra.mxu0 0.0
    %83 = vmatprep.subr.mxu0 0.0
    %84 = vmatpush1.msra.mxu0 0.0
    %85 = vmatprep.subr.mxu0 0.0
    %86 = vmatpush1.msra.mxu0 0.0
    %87 = vmatprep.subr.mxu0 0.0
    %88 = vmatpush1.msra.mxu0 0.0
    %89 = vmatprep.subr.mxu0 0.0
    %90 = vmatpush1.msra.mxu0 0.0
    %91 = vmatprep.subr.mxu0 0.0
    %92 = vmatpush1.msra.mxu0 0.0
    %93 = vmatprep.subr.mxu0 0.0
    %94 = vmatpush1.msra.mxu0 0.0
    %95 = vmatprep.subr.mxu0 0.0
    %96 = vmatpush1.msra.mxu0 0.0
    %97 = vmatprep.subr.mxu0 0.0
    %98 = vmatpush1.msra.mxu0 0.0
    %99 = vmatprep.subr.mxu0 0.0
    %100 = vmatpush1.msra.mxu0 0.0
    %101 = vmatprep.subr.mxu0 0.0
    %102 = vmatpush1.msra.mxu0 0.0
    %103 = vmatprep.subr.mxu0 0.0
    %104 = vmatpush1.msra.mxu0 0.0
    %105 = vmatprep.subr.mxu0 0.0
    %106 = vmatpush1.msra.mxu0 0.0
    %107 = vmatprep.subr.mxu0 0.0
    %108 = vmatpush1.msra.mxu0 0.0
    %109 = vmatprep.subr.mxu0 0.0
    %110 = vmatpush1.msra.mxu0 0.0
    %111 = vmatprep.subr.mxu0 0.0
    %112 = vmatpush1.msra.mxu0 0.0
    %113 = vmatprep.subr.mxu0 0.0
    %114 = vmatpush1.msra.mxu0 0.0
    %115 = vmatprep.subr.mxu0 0.0
    %116 = vmatpush1.msra.mxu0 0.0
    %117 = vmatprep.subr.mxu0 0.0
    %118 = vmatpush1.msra.mxu0 0.0
    %119 = vmatprep.subr.mxu0 0.0
    %120 = vmatpush1.msra.mxu0 0.0
    %121 = vmatprep.subr.mxu0 0.0
    %122 = vmatpush1.msra.mxu0 0.0
    %123 = vmatprep.subr.mxu0 0.0
    %124 = vmatpush1.msra.mxu0 0.0
    %125 = vmatprep.subr.mxu0 0.0
    %126 = vmatpush1.msra.mxu0 0.0
    %127 = vmatprep.subr.mxu0 0.0
    %128 = vmatpush1.msra.mxu0 0.0
    %129 = vmatprep.mubr.f32.mxu0 0.0
    %130 = vmatmul.mubr.f32.gmra.mrb[0].mxu0 %v59
    %v131 = vpop.f32.mrb[0].mxu0
    %v132 = vadd.f32 %v55, %v131
    %v133 = vpop.f32.mrb[0].mxu0
    %134 = vdwg.mxu0
    %v135 = vmax.f32 %v132, 0.0
    %v136 = vld [vmem:[%s3] sm:$0xff]
    %vm137 = vcmp.lt.u32.totalorder %v136, 2791728742
    %v138 = vmul.f32 %v135, 1.5384616
    %v139 = vsel %vm137, %v138, 0.0
    %140 = vst [vmem:[#allocation7] sm:$0xff] %v139
    // Predicated region
    $region26: #{tpu_custom_call.1} parent=1 // pred_check
      _
    $region27: #{tpu_custom_call.1} parent=1 // pred_check_branch
      %142 = sbr.rel (0) target = $region29
    $region28: #{tpu_custom_call.1} parent=1 // pred_region
      %s144 = ssub.s32 128, 128
      %145 = vsyncadd [#allocation4], %s144
      %s147 = sshll.u32 [#allocation7], 4
      %s148 = int_to_ptr.vmem [resolvable:$true] %s147
      %150 = dma.vmem_to_hbm [thread:$0]  %s148, 128, %s4, [#allocation4]
    $region29: #{tpu_custom_call.1} parent=1 // pred_fallthru
      _
    // Predicated region
    $region30: #{tpu_custom_call.1} parent=1 // pred_check
      _
    $region31: #{tpu_custom_call.1} parent=1 // pred_check_branch
      %152 = sbr.rel (0) target = $region33
    $region32: #{tpu_custom_call.1} parent=1 // pred_region
      %153 = dma.done [#allocation4], 128
    $region33: #{tpu_custom_call.1} parent=1 // pred_fallthru
      _
    %154 = vsyncpa [#allocation3], 1
    %155 = vsyncpa [#allocation6], 1
    %156 = vsyncpa [#allocation4], 1

</llo_original>
